<compile_context>
chip_gen: v7x
topology: tpu7x:2x2x1
jax: 0.10.0
libtpu: 0.0.40
codegen_flags: <defaults>
</compile_context>

<pallas_src>
import jax
import jax.numpy as jnp
from jax.experimental import pallas as pl
from jax.experimental.pallas import tpu as pltpu


def _click_prob_kernel(cand_ref, user_ref, out_ref):
    # cand_ref: (TB, N, D), user_ref: (TB, D), out_ref: (TB, N)
    cand = cand_ref[...]                 # input dtype (bf16 stays bf16 on v6e/v7x VALUs)
    user = user_ref[...]

    # scores[b, n] = sum_d cand[b, n, d] * user[b, d]
    # VPU broadcast-multiply + lane reduction (no MXU, no transpose); f32 accumulation.
    scores = jnp.sum(cand * user[:, None, :], axis=-1, dtype=jnp.float32)  # (TB, N)

    # Softmax over the candidate axis (torch dim=1), max-stabilized, exact division.
    m = jnp.max(scores, axis=-1, keepdims=True)
    e = jnp.exp(scores - m)
    denom = jnp.sum(e, axis=-1, keepdims=True)
    out_ref[...] = (e / denom).astype(out_ref.dtype)


def _round_up(x, m):
    return ((x + m - 1) // m) * m


def _cdiv(a, b):
    return (a + b - 1) // b


def _vmem_capacity_bytes():
    # Per-generation VMEM capacity (128 MiB v5e/v6e, 64 MiB per-TC v7x).
    try:
        return int(pltpu.get_tpu_info().vmem_capacity_bytes)
    except Exception:
        return 64 * 1024 * 1024  # conservative fallback (v7x per-TC)


def _choose_batch_tile(b, n, d, itemsize, vmem_limit):
    # Per-batch-row costs.
    row_bytes = n * d * itemsize                  # one candidate row in HBM/VMEM
    per_row_vmem = n * d * (2 * itemsize + 4)     # 2x double-buffered input + ~f32 working set

    # Guard: even the minimum (TB=8) tile must fit the VMEM budget.
    if 8 * per_row_vmem > vmem_limit:
        # TODO(synk): add an N-tiling grid axis (two-pass / online softmax) for very large N*D.
        raise ValueError(
            f"Candidate tile (8, {n}, {d}) needs ~{8 * per_row_vmem} bytes of VMEM, "
            f"which exceeds the budget of {vmem_limit} bytes; N/D tiling not implemented.")

    # Target ~8 MiB candidate tiles (amortizes the ~0.35 us per-grid-step overhead),
    # capped by 3/4 of the VMEM budget to leave headroom for temporaries.
    target_tile_bytes = 8 * 1024 * 1024
    tb = min(target_tile_bytes // max(1, row_bytes),
             (vmem_limit * 3 // 4) // max(1, per_row_vmem))
    tb = max(8, (tb // 8) * 8)

    # Keep at least 2 grid steps when B allows it so megacore sharding (v7x) engages.
    if b > 8:
        tb = min(tb, _round_up(_cdiv(b, 2), 8))

    # Never a block larger than the (rounded-up) batch itself.
    tb = min(tb, _round_up(b, 8))
    return tb


def dot_product_click_predictor(candidate_news_vector, user_vector):
    """candidate_news_vector: (B, N, D), user_vector: (B, D) -> (B, N) probabilities."""
    B, N, D = candidate_news_vector.shape
    assert user_vector.shape == (B, D)
    out_dtype = candidate_news_vector.dtype
    itemsize = jnp.dtype(candidate_news_vector.dtype).itemsize

    vmem_cap = _vmem_capacity_bytes()
    vmem_limit = int(min(96 * 1024 * 1024, (vmem_cap * 3) // 4))  # ~48 MiB v7x, 96 MiB v5e/v6e
    TB = _choose_batch_tile(B, N, D, itemsize, vmem_limit)

    grid = (_cdiv(B, TB),)  # no padding: boundary block is partial, OOB stores are masked

    out = pl.pallas_call(
        _click_prob_kernel,
        out_shape=jax.ShapeDtypeStruct((B, N), out_dtype),
        grid_spec=pltpu.PrefetchScalarGridSpec(
            num_scalar_prefetch=0,
            grid=grid,
            in_specs=[
                pl.BlockSpec((TB, N, D), lambda b: (b, 0, 0)),
                pl.BlockSpec((TB, D), lambda b: (b, 0)),
            ],
            out_specs=pl.BlockSpec((TB, N), lambda b: (b, 0)),
        ),
        compiler_params=pltpu.CompilerParams(
            dimension_semantics=("parallel",),   # rows independent -> megacore on v7x
            vmem_limit_bytes=vmem_limit,
        ),
    )(candidate_news_vector, user_vector)

    return out


if __name__ == "__main__":
    B, N, D = 2, 8, 32  # batch, num candidate news, hidden dim

    key = jax.random.PRNGKey(0)
    k_cand, k_user = jax.random.split(key)
    candidate_news_vector = jax.random.normal(k_cand, (B, N, D), dtype=jnp.float32)
    user_vector = jax.random.normal(k_user, (B, D), dtype=jnp.float32)

    prob = dot_product_click_predictor(candidate_news_vector, user_vector)
    prob = jax.block_until_ready(prob)

    # Reference check (plain JAX) — same math as the PyTorch forward.
    ref_scores = jnp.einsum("bnd,bd->bn", candidate_news_vector, user_vector)
    ref_prob = jax.nn.softmax(ref_scores, axis=1)
    assert prob.shape == (B, N)
    assert jnp.allclose(prob, ref_prob, atol=1e-5, rtol=1e-5)
    assert jnp.allclose(jnp.sum(prob, axis=1), 1.0, atol=1e-5)

    print("KERNEL_OK")
</pallas_src>

<mosaic_0001>
module attributes {stable_mosaic.version = 11 : i64} {
  func.func @_click_prob_kernel(%arg0: i32, %arg1: memref<8x8x32xf32, #tpu.memory_space<vmem>>, %arg2: memref<8x32xf32, #tpu.memory_space<vmem>>, %arg3: memref<8x8xf32, #tpu.memory_space<vmem>>) attributes {dimension_semantics = [#tpu.dimension_semantics<parallel>], iteration_bounds = array<i64: 1>, scalar_prefetch = 0 : i64, scratch_operands = 0 : i64, tpu.core_type = #tpu.core_type<tc>, window_params = [{transform_indices = @transform_0, window_bounds = array<i64: 8, 8, 32>}, {transform_indices = @transform_1, window_bounds = array<i64: 8, 32>}, {transform_indices = @transform_2, window_bounds = array<i64: 8, 8>}]} {
    %c0 = arith.constant 0 : index
    %c0_0 = arith.constant 0 : index
    %c0_1 = arith.constant 0 : index
    %0 = vector.load %arg1[%c0, %c0_0, %c0_1] : memref<8x8x32xf32, #tpu.memory_space<vmem>>, vector<8x8x32xf32>
    %c0_2 = arith.constant 0 : index
    %c0_3 = arith.constant 0 : index
    %1 = vector.load %arg2[%c0_2, %c0_3] : memref<8x32xf32, #tpu.memory_space<vmem>>, vector<8x32xf32>
    %2 = vector.shape_cast %1 : vector<8x32xf32> to vector<8x1x32xf32>
    %3 = vector.broadcast %2 : vector<8x1x32xf32> to vector<8x8x32xf32>
    %4 = arith.mulf %0, %3 : vector<8x8x32xf32>
    %cst = arith.constant dense<0.000000e+00> : vector<8x8xf32>
    %5 = vector.multi_reduction <add>, %4, %cst [2] : vector<8x8x32xf32> to vector<8x8xf32>
    %cst_4 = arith.constant dense<0xFF800000> : vector<8xf32>
    %6 = vector.multi_reduction <maximumf>, %5, %cst_4 [1] : vector<8x8xf32> to vector<8xf32>
    %7 = vector.shape_cast %6 : vector<8xf32> to vector<8x1xf32>
    %8 = vector.broadcast %7 : vector<8x1xf32> to vector<8x8xf32>
    %9 = arith.subf %5, %8 : vector<8x8xf32>
    %10 = math.exp %9 : vector<8x8xf32>
    %cst_5 = arith.constant dense<0.000000e+00> : vector<8xf32>
    %11 = vector.multi_reduction <add>, %10, %cst_5 [1] : vector<8x8xf32> to vector<8xf32>
    %12 = vector.shape_cast %11 : vector<8xf32> to vector<8x1xf32>
    %13 = vector.broadcast %12 : vector<8x1xf32> to vector<8x8xf32>
    %14 = arith.divf %10, %13 : vector<8x8xf32>
    %c0_6 = arith.constant 0 : index
    %c0_7 = arith.constant 0 : index
    %15 = vector.load %arg3[%c0_6, %c0_7] : memref<8x8xf32, #tpu.memory_space<vmem>>, vector<8x8xf32>
    tpu.vector_store %arg3[%c0_6, %c0_7], %14 {strides = array<i32>} : memref<8x8xf32, #tpu.memory_space<vmem>>, vector<8x8xf32>,
    return
  }
  func.func @transform_0(%arg0: i32) -> (i32, i32, i32) {
    %c0_i32 = arith.constant 0 : i32
    %c0_i32_0 = arith.constant 0 : i32
    %c0_i32_1 = arith.constant 0 : i32
    return %arg0, %c0_i32, %c0_i32_0 : i32, i32, i32
  }
  func.func @transform_1(%arg0: i32) -> (i32, i32) {
    %c0_i32 = arith.constant 0 : i32
    %c0_i32_0 = arith.constant 0 : i32
    return %arg0, %c0_i32 : i32, i32
  }
  func.func @transform_2(%arg0: i32) -> (i32, i32) {
    %c0_i32 = arith.constant 0 : i32
    %c0_i32_0 = arith.constant 0 : i32
    return %arg0, %c0_i32 : i32, i32
  }
}

</mosaic_0001>

<llo_original>
// kernel: tpu_custom_call.1
$region0: #{tpu_custom_call.1}
  #allocation0 [shape = 'u32[]', space=smem, size = 0x4, offset = 0x4, fixed_abs, tag = 'smem constant byte address 0x4 - core index']
  #allocation1 [shape = 'u32[144,128]{1,0:T(1,128)}', space=vmem, size = 0x12000, scoped, tag = 'internal scratch']
  %s0 = inlined_call_operand.hbm [shape: f32[2,8,32], index: 0, kind: input, shape index: {}]
  %s1 = inlined_call_operand.vmem [shape: f32[2,32], index: 1, kind: input, shape index: {}]
  %s2 = inlined_call_operand.hbm [shape: f32[2,8], index: 2, kind: output, shape index: {}]
  %s3 = sld [smem:[#allocation0]]
  $region22: #{tpu_custom_call.1} parent=0
    _
  %s5 = ssub.s32 1, %s3
  %s6 = scalar_select 0, %s5, %s3
  $region1: #{tpu_custom_call.1} parent=0
    #allocation2 [shape = 'u8[32768]{0}', space=vmem, size = 0x8000, scoped, tag = 'input window, operand 0, single buffered']
    #allocation3 [shape = 's32[1]{0}', space=sflag, size = 0x4, scoped, tag = 'scoped memory for tpu_custom_call.1']
    #allocation4 [shape = 's32[1]{0}', space=sflag, size = 0x4, scoped, tag = 'scoped memory for tpu_custom_call.1']
    #allocation5 [shape = 'u8[4096]{0}', space=vmem, size = 0x1000, scoped, tag = 'output window, operand 0, single buffered']
    %7 = vsyncpa [#allocation3], 0
    %8 = vsyncpa [#allocation4], 0
    // Predicated region
    $region2: #{tpu_custom_call.1} parent=1 // pred_check
      _
    $region3: #{tpu_custom_call.1} parent=1 // pred_check_branch
      %10 = sbr.rel (0) target = $region5
    $region4: #{tpu_custom_call.1} parent=1 // pred_region
      %s12 = ssub.s32 1024, 256
      %13 = vsyncadd [#allocation3], %s12
      %s14 = sshll.u32 [#allocation2], 4
      %s15 = int_to_ptr.vmem [resolvable:$true] %s14
      %20 = dma.hbm_to_vmem [thread:$0]  %s0, 256, %s15, [#allocation3], 128, 128, 8
    $region5: #{tpu_custom_call.1} parent=1 // pred_fallthru
      _
    // Predicated region
    $region6: #{tpu_custom_call.1} parent=1 // pred_check
      _
    $region7: #{tpu_custom_call.1} parent=1 // pred_check_branch
      %22 = sbr.rel (0) target = $region9
    $region8: #{tpu_custom_call.1} parent=1 // pred_region
      _
    $region9: #{tpu_custom_call.1} parent=1 // pred_fallthru
      _
    // Predicated region
    $region10: #{tpu_custom_call.1} parent=1 // pred_check
      _
    $region11: #{tpu_custom_call.1} parent=1 // pred_check_branch
      %24 = sbr.rel (0) target = $region13
    $region12: #{tpu_custom_call.1} parent=1 // pred_region
      %25 = dma.done [#allocation3], 1024
    $region13: #{tpu_custom_call.1} parent=1 // pred_fallthru
      _
    %v26 = vld [vmem:[#allocation2] sm:$0xff]
    %v27 = vld [vmem:[#allocation2 + $0x8] sm:$0xff]
    %v28 = vld [vmem:[#allocation2 + $0x10] sm:$0xff]
    %v29 = vld [vmem:[#allocation2 + $0x18] sm:$0xff]
    %v30 = vld [vmem:[#allocation2 + $0x20] sm:$0xff]
    %v31 = vld [vmem:[#allocation2 + $0x28] sm:$0xff]
    %v32 = vld [vmem:[#allocation2 + $0x30] sm:$0xff]
    %v33 = vld [vmem:[#allocation2 + $0x38] sm:$0xff]
    %v34 = vld [vmem:[%s1] sm:$0xff]
    %v36 = vcombine.high %v34, %v34
    %v38 = vunpack.c.l.s4 1966171168
    %v39 = vunpack.c.0.s8 %v38
    %v40 = vlaneseq
    %v41 = vshrl.u32 %v40, 7
    %v42 = vsub.s32 %v39, %v41
    %v43 = vrot.slane %v34, %v42
    %v45 = vunpack.c.l.s4 1966171168
    %v46 = vunpack.c.0.s8 %v45
    %v47 = vlaneseq
    %v48 = vshrl.u32 %v47, 7
    %v49 = vsub.s32 %v46, %v48
    %v50 = vrot.slane %v36, %v49
    %v51 = vcombine.high %v43, %v43
    %v52 = vcombine.high %v50, %v50
    %v54 = vunpack.c.l.s4 1966171168
    %v55 = vunpack.c.0.s8 %v54
    %v56 = vlaneseq
    %v57 = vshrl.u32 %v56, 7
    %v58 = vsub.s32 %v55, %v57
    %v59 = vrot.slane %v43, %v58
    %v61 = vunpack.c.l.s4 1966171168
    %v62 = vunpack.c.0.s8 %v61
    %v63 = vlaneseq
    %v64 = vshrl.u32 %v63, 7
    %v65 = vsub.s32 %v62, %v64
    %v66 = vrot.slane %v50, %v65
    %v68 = vunpack.c.l.s4 1966171168
    %v69 = vunpack.c.0.s8 %v68
    %v70 = vlaneseq
    %v71 = vshrl.u32 %v70, 7
    %v72 = vsub.s32 %v69, %v71
    %v73 = vrot.slane %v51, %v72
    %v75 = vunpack.c.l.s4 1966171168
    %v76 = vunpack.c.0.s8 %v75
    %v77 = vlaneseq
    %v78 = vshrl.u32 %v77, 7
    %v79 = vsub.s32 %v76, %v78
    %v80 = vrot.slane %v52, %v79
    %v81 = vcombine.high %v59, %v59
    %v82 = vcombine.high %v66, %v66
    %v83 = vcombine.high %v73, %v73
    %v84 = vcombine.high %v80, %v80
    %v85 = vlaneseq
    %v86 = vshrl.u32 %v85, 7
    %v87 = vsub.s32 0, %v86
    %v88 = vrot.slane %v59, %v87
    %v89 = vlaneseq
    %v90 = vshrl.u32 %v89, 7
    %v91 = vsub.s32 0, %v90
    %v92 = vrot.slane %v73, %v91
    %v93 = vlaneseq
    %v94 = vshrl.u32 %v93, 7
    %v95 = vsub.s32 0, %v94
    %v96 = vrot.slane %v81, %v95
    %v97 = vlaneseq
    %v98 = vshrl.u32 %v97, 7
    %v99 = vsub.s32 0, %v98
    %v100 = vrot.slane %v83, %v99
    %v101 = vlaneseq
    %v102 = vshrl.u32 %v101, 7
    %v103 = vsub.s32 0, %v102
    %v104 = vrot.slane %v66, %v103
    %v105 = vlaneseq
    %v106 = vshrl.u32 %v105, 7
    %v107 = vsub.s32 0, %v106
    %v108 = vrot.slane %v80, %v107
    %v109 = vlaneseq
    %v110 = vshrl.u32 %v109, 7
    %v111 = vsub.s32 0, %v110
    %v112 = vrot.slane %v82, %v111
    %v113 = vlaneseq
    %v114 = vshrl.u32 %v113, 7
    %v115 = vsub.s32 0, %v114
    %v116 = vrot.slane %v84, %v115
    %v125 = vmul.f32 %v26, %v88
    %v126 = vmul.f32 %v27, %v92
    %v127 = vmul.f32 %v28, %v96
    %v128 = vmul.f32 %v29, %v100
    %v129 = vmul.f32 %v30, %v104
    %v130 = vmul.f32 %v31, %v108
    %v131 = vmul.f32 %v32, %v112
    %v132 = vmul.f32 %v33, %v116
    %vm133 = vcmask 261120
    %v134 = vsel %vm133, %v125, 0.0
    %135 = vadd.xlane.f32.xlu0 %v134
    %v136 = vpop.xlane.xlu0 %135
    %v137 = vsel %vm133, %v126, 0.0
    %138 = vadd.xlane.f32.xlu0 %v137
    %v139 = vpop.xlane.xlu0 %138
    %v140 = vsel %vm133, %v127, 0.0
    %141 = vadd.xlane.f32.xlu0 %v140
    %v142 = vpop.xlane.xlu0 %141
    %v143 = vsel %vm133, %v128, 0.0
    %144 = vadd.xlane.f32.xlu0 %v143
    %v145 = vpop.xlane.xlu0 %144
    %v146 = vsel %vm133, %v129, 0.0
    %147 = vadd.xlane.f32.xlu0 %v146
    %v148 = vpop.xlane.xlu0 %147
    %v149 = vsel %vm133, %v130, 0.0
    %150 = vadd.xlane.f32.xlu0 %v149
    %v151 = vpop.xlane.xlu0 %150
    %v152 = vsel %vm133, %v131, 0.0
    %153 = vadd.xlane.f32.xlu0 %v152
    %v154 = vpop.xlane.xlu0 %153
    %v155 = vsel %vm133, %v132, 0.0
    %156 = vadd.xlane.f32.xlu0 %v155
    %v157 = vpop.xlane.xlu0 %156
    %v166 = vlaneseq
    %v167 = vand.u32 %v166, 127
    %v168 = vlaneseq
    %v169 = vshrl.u32 %v168, 7
    %v170 = vsub.s32 %v167, %v169
    %v171 = vrot.slane %v136, %v170
    %v172 = vlaneseq
    %v173 = vshrl.u32 %v172, 7
    %v174 = vsub.s32 %v167, %v173
    %v175 = vrot.slane %v139, %v174
    %v176 = vlaneseq
    %v177 = vshrl.u32 %v176, 7
    %v178 = vsub.s32 %v167, %v177
    %v179 = vrot.slane %v142, %v178
    %v180 = vlaneseq
    %v181 = vshrl.u32 %v180, 7
    %v182 = vsub.s32 %v167, %v181
    %v183 = vrot.slane %v145, %v182
    %v184 = vlaneseq
    %v185 = vshrl.u32 %v184, 7
    %v186 = vsub.s32 %v167, %v185
    %v187 = vrot.slane %v148, %v186
    %v188 = vlaneseq
    %v189 = vshrl.u32 %v188, 7
    %v190 = vsub.s32 %v167, %v189
    %v191 = vrot.slane %v151, %v190
    %v192 = vlaneseq
    %v193 = vshrl.u32 %v192, 7
    %v194 = vsub.s32 %v167, %v193
    %v195 = vrot.slane %v154, %v194
    %v196 = vlaneseq
    %v197 = vshrl.u32 %v196, 7
    %v198 = vsub.s32 %v167, %v197
    %v199 = vrot.slane %v157, %v198
    %vm200 = vcmask 1041409
    %v201 = vsel %vm200, %v175, %v171
    %vm202 = vcmask 1042434
    %v203 = vsel %vm202, %v179, %v201
    %vm204 = vcmask 1043459
    %v205 = vsel %vm204, %v183, %v203
    %vm206 = vcmask 1044484
    %v207 = vsel %vm206, %v187, %v205
    %vm208 = vcmask 1045509
    %v209 = vsel %vm208, %v191, %v207
    %vm210 = vcmask 1046534
    %v211 = vsel %vm210, %v195, %v209
    %vm212 = vcmask 1047559
    %v213 = vsel %vm212, %v199, %v211
    %vm215 = vcmask 64512
    %v216 = vsel %vm215, %v213, -inf
    %217 = vmax.xlane.f32.xlu0 %v216
    %v218 = vpop.xlane.xlu0 %217
    %v220 = vlaneseq
    %v221 = vshrl.u32 %v220, 7
    %v222 = vsub.s32 0, %v221
    %v223 = vrot.slane %v218, %v222
    %v224 = vlaneseq
    %v225 = vshrl.u32 %v224, 7
    %v226 = vsub.s32 1, %v225
    %v227 = vrot.slane %v218, %v226
    %v228 = vlaneseq
    %v229 = vshrl.u32 %v228, 7
    %v230 = vsub.s32 2, %v229
    %v231 = vrot.slane %v218, %v230
    %v232 = vlaneseq
    %v233 = vshrl.u32 %v232, 7
    %v234 = vsub.s32 3, %v233
    %v235 = vrot.slane %v218, %v234
    %v236 = vlaneseq
    %v237 = vshrl.u32 %v236, 7
    %v238 = vsub.s32 4, %v237
    %v239 = vrot.slane %v218, %v238
    %v240 = vlaneseq
    %v241 = vshrl.u32 %v240, 7
    %v242 = vsub.s32 5, %v241
    %v243 = vrot.slane %v218, %v242
    %v244 = vlaneseq
    %v245 = vshrl.u32 %v244, 7
    %v246 = vsub.s32 6, %v245
    %v247 = vrot.slane %v218, %v246
    %v248 = vlaneseq
    %v249 = vshrl.u32 %v248, 7
    %v250 = vsub.s32 7, %v249
    %v251 = vrot.slane %v218, %v250
    %v260 = vsub.f32 %v136, %v223
    %v261 = vsub.f32 %v139, %v227
    %v262 = vsub.f32 %v142, %v231
    %v263 = vsub.f32 %v145, %v235
    %v264 = vsub.f32 %v148, %v239
    %v265 = vsub.f32 %v151, %v243
    %v266 = vsub.f32 %v154, %v247
    %v267 = vsub.f32 %v157, %v251
    %v268 = vmul.f32 %v260, 1.442695
    %v269 = vpow.pop %v268
    %v270 = vmul.f32 %v261, 1.442695
    %v271 = vpow.pop %v270
    %v272 = vmul.f32 %v262, 1.442695
    %v273 = vpow.pop %v272
    %v274 = vmul.f32 %v263, 1.442695
    %v275 = vpow.pop %v274
    %v276 = vmul.f32 %v264, 1.442695
    %v277 = vpow.pop %v276
    %v278 = vmul.f32 %v265, 1.442695
    %v279 = vpow.pop %v278
    %v280 = vmul.f32 %v266, 1.442695
    %v281 = vpow.pop %v280
    %v282 = vmul.f32 %v267, 1.442695
    %v283 = vpow.pop %v282
    %292 = vset.pattern.permute.xlu0 0
    %293 = vperm.xlu0 %292, %v269
    %v294 = vpop.permute.xlu0 %293
    %295 = vset.pattern.permute.xlu0 0
    %296 = vperm.xlu0 %295, %v271
    %v297 = vpop.permute.xlu0 %296
    %298 = vset.pattern.permute.xlu0 0
    %299 = vperm.xlu0 %298, %v273
    %v300 = vpop.permute.xlu0 %299
    %301 = vset.pattern.permute.xlu0 0
    %302 = vperm.xlu0 %301, %v275
    %v303 = vpop.permute.xlu0 %302
    %304 = vset.pattern.permute.xlu0 0
    %305 = vperm.xlu0 %304, %v277
    %v306 = vpop.permute.xlu0 %305
    %307 = vset.pattern.permute.xlu0 0
    %308 = vperm.xlu0 %307, %v279
    %v309 = vpop.permute.xlu0 %308
    %310 = vset.pattern.permute.xlu0 0
    %311 = vperm.xlu0 %310, %v281
    %v312 = vpop.permute.xlu0 %311
    %313 = vset.pattern.permute.xlu0 0
    %314 = vperm.xlu0 %313, %v283
    %v315 = vpop.permute.xlu0 %314
    %v316 = vlaneseq
    %v317 = vshrl.u32 %v316, 7
    %v318 = vsub.s32 %v167, %v317
    %v319 = vrot.slane %v294, %v318
    %v320 = vlaneseq
    %v321 = vshrl.u32 %v320, 7
    %v322 = vsub.s32 %v167, %v321
    %v323 = vrot.slane %v297, %v322
    %v324 = vlaneseq
    %v325 = vshrl.u32 %v324, 7
    %v326 = vsub.s32 %v167, %v325
    %v327 = vrot.slane %v300, %v326
    %v328 = vlaneseq
    %v329 = vshrl.u32 %v328, 7
    %v330 = vsub.s32 %v167, %v329
    %v331 = vrot.slane %v303, %v330
    %v332 = vlaneseq
    %v333 = vshrl.u32 %v332, 7
    %v334 = vsub.s32 %v167, %v333
    %v335 = vrot.slane %v306, %v334
    %v336 = vlaneseq
    %v337 = vshrl.u32 %v336, 7
    %v338 = vsub.s32 %v167, %v337
    %v339 = vrot.slane %v309, %v338
    %v340 = vlaneseq
    %v341 = vshrl.u32 %v340, 7
    %v342 = vsub.s32 %v167, %v341
    %v343 = vrot.slane %v312, %v342
    %v344 = vlaneseq
    %v345 = vshrl.u32 %v344, 7
    %v346 = vsub.s32 %v167, %v345
    %v347 = vrot.slane %v315, %v346
    %v348 = vsel %vm200, %v323, %v319
    %v349 = vsel %vm202, %v327, %v348
    %v350 = vsel %vm204, %v331, %v349
    %v351 = vsel %vm206, %v335, %v350
    %v352 = vsel %vm208, %v339, %v351
    %v353 = vsel %vm210, %v343, %v352
    %v354 = vsel %vm212, %v347, %v353
    %v356 = vsel %vm215, %v354, 0.0
    %357 = vadd.xlane.f32.xlu0 %v356
    %v358 = vpop.xlane.xlu0 %357
    %v360 = vlaneseq
    %v361 = vshrl.u32 %v360, 7
    %v362 = vsub.s32 0, %v361
    %v363 = vrot.slane %v358, %v362
    %v364 = vlaneseq
    %v365 = vshrl.u32 %v364, 7
    %v366 = vsub.s32 1, %v365
    %v367 = vrot.slane %v358, %v366
    %v368 = vlaneseq
    %v369 = vshrl.u32 %v368, 7
    %v370 = vsub.s32 2, %v369
    %v371 = vrot.slane %v358, %v370
    %v372 = vlaneseq
    %v373 = vshrl.u32 %v372, 7
    %v374 = vsub.s32 3, %v373
    %v375 = vrot.slane %v358, %v374
    %v376 = vlaneseq
    %v377 = vshrl.u32 %v376, 7
    %v378 = vsub.s32 4, %v377
    %v379 = vrot.slane %v358, %v378
    %v380 = vlaneseq
    %v381 = vshrl.u32 %v380, 7
    %v382 = vsub.s32 5, %v381
    %v383 = vrot.slane %v358, %v382
    %v384 = vlaneseq
    %v385 = vshrl.u32 %v384, 7
    %v386 = vsub.s32 6, %v385
    %v387 = vrot.slane %v358, %v386
    %v388 = vlaneseq
    %v389 = vshrl.u32 %v388, 7
    %v390 = vsub.s32 7, %v389
    %v391 = vrot.slane %v358, %v390
    %v400 = vrcp.pop %v363
    %v401 = vmul.f32 %v269, %v400
    %v402 = vrcp.pop %v367
    %v403 = vmul.f32 %v271, %v402
    %v404 = vrcp.pop %v371
    %v405 = vmul.f32 %v273, %v404
    %v406 = vrcp.pop %v375
    %v407 = vmul.f32 %v275, %v406
    %v408 = vrcp.pop %v379
    %v409 = vmul.f32 %v277, %v408
    %v410 = vrcp.pop %v383
    %v411 = vmul.f32 %v279, %v410
    %v412 = vrcp.pop %v387
    %v413 = vmul.f32 %v281, %v412
    %v414 = vrcp.pop %v391
    %v415 = vmul.f32 %v283, %v414
    %424 = vset.pattern.permute.xlu0 0
    %425 = vperm.xlu0 %424, %v401
    %v426 = vpop.permute.xlu0 %425
    %427 = vset.pattern.permute.xlu0 0
    %428 = vperm.xlu0 %427, %v403
    %v429 = vpop.permute.xlu0 %428
    %430 = vset.pattern.permute.xlu0 0
    %431 = vperm.xlu0 %430, %v405
    %v432 = vpop.permute.xlu0 %431
    %433 = vset.pattern.permute.xlu0 0
    %434 = vperm.xlu0 %433, %v407
    %v435 = vpop.permute.xlu0 %434
    %436 = vset.pattern.permute.xlu0 0
    %437 = vperm.xlu0 %436, %v409
    %v438 = vpop.permute.xlu0 %437
    %439 = vset.pattern.permute.xlu0 0
    %440 = vperm.xlu0 %439, %v411
    %v441 = vpop.permute.xlu0 %440
    %442 = vset.pattern.permute.xlu0 0
    %443 = vperm.xlu0 %442, %v413
    %v444 = vpop.permute.xlu0 %443
    %445 = vset.pattern.permute.xlu0 0
    %446 = vperm.xlu0 %445, %v415
    %v447 = vpop.permute.xlu0 %446
    %v448 = vlaneseq
    %v449 = vshrl.u32 %v448, 7
    %v450 = vsub.s32 %v167, %v449
    %v451 = vrot.slane %v426, %v450
    %v452 = vlaneseq
    %v453 = vshrl.u32 %v452, 7
    %v454 = vsub.s32 %v167, %v453
    %v455 = vrot.slane %v429, %v454
    %v456 = vlaneseq
    %v457 = vshrl.u32 %v456, 7
    %v458 = vsub.s32 %v167, %v457
    %v459 = vrot.slane %v432, %v458
    %v460 = vlaneseq
    %v461 = vshrl.u32 %v460, 7
    %v462 = vsub.s32 %v167, %v461
    %v463 = vrot.slane %v435, %v462
    %v464 = vlaneseq
    %v465 = vshrl.u32 %v464, 7
    %v466 = vsub.s32 %v167, %v465
    %v467 = vrot.slane %v438, %v466
    %v468 = vlaneseq
    %v469 = vshrl.u32 %v468, 7
    %v470 = vsub.s32 %v167, %v469
    %v471 = vrot.slane %v441, %v470
    %v472 = vlaneseq
    %v473 = vshrl.u32 %v472, 7
    %v474 = vsub.s32 %v167, %v473
    %v475 = vrot.slane %v444, %v474
    %v476 = vlaneseq
    %v477 = vshrl.u32 %v476, 7
    %v478 = vsub.s32 %v167, %v477
    %v479 = vrot.slane %v447, %v478
    %v480 = vsel %vm200, %v455, %v451
    %v481 = vsel %vm202, %v459, %v480
    %v482 = vsel %vm204, %v463, %v481
    %v483 = vsel %vm206, %v467, %v482
    %v484 = vsel %vm208, %v471, %v483
    %v485 = vsel %vm210, %v475, %v484
    %v486 = vsel %vm212, %v479, %v485
    %488 = vst.msk [vmem:[#allocation5] sm:$0xff] %vm215, %v486
    // Predicated region
    $region14: #{tpu_custom_call.1} parent=1 // pred_check
      _
    $region15: #{tpu_custom_call.1} parent=1 // pred_check_branch
      %490 = sbr.rel (0) target = $region17
    $region16: #{tpu_custom_call.1} parent=1 // pred_region
      %s492 = ssub.s32 128, 32
      %493 = vsyncadd [#allocation4], %s492
      %s494 = sshll.u32 [#allocation5], 4
      %s495 = int_to_ptr.vmem [resolvable:$true] %s494
      %500 = dma.vmem_to_hbm [thread:$0]  %s495, 32, %s2, [#allocation4], 32, 32, 2
    $region17: #{tpu_custom_call.1} parent=1 // pred_fallthru
      _
    // Predicated region
    $region18: #{tpu_custom_call.1} parent=1 // pred_check
      _
    $region19: #{tpu_custom_call.1} parent=1 // pred_check_branch
      %502 = sbr.rel (0) target = $region21
    $region20: #{tpu_custom_call.1} parent=1 // pred_region
      %503 = dma.done [#allocation4], 128
    $region21: #{tpu_custom_call.1} parent=1 // pred_fallthru
      _
    %504 = vsyncpa [#allocation3], 1
    %505 = vsyncpa [#allocation4], 1

</llo_original>
